<compile_context>
chip_gen: v6e
topology: v6e:2x2x1
jax: 0.10.0
libtpu: 0.0.40
codegen_flags: <defaults>
</compile_context>

<pallas_src>
import functools

import jax
import jax.numpy as jnp
import numpy as np
from jax.experimental import pallas as pl
from jax.experimental.pallas import tpu as pltpu


def _sru_kernel(x_ref, p_ref, w_ref, b_ref, wg_ref, o_ref, *,
                group_num, gate, eps, hw_true):
    # x_ref : (bn, C, HWp)   bn batch elements (lane-padded spatial)
    # p_ref : (C, C)         group-membership matrix (constant, resident)
    # w_ref : (C, 1)         GroupBatchnorm2d weight (gamma)
    # b_ref : (C, 1)         GroupBatchnorm2d bias (beta)
    # wg_ref: (C, 1)         precomputed w_gamma = w / sum(w)
    bn, C, HWp = x_ref.shape
    cg = C // group_num                 # channels per group
    M = cg * hw_true                    # true elements per group
    h = C // 2

    P = p_ref[...]                      # (C, C)
    w = w_ref[...]                      # (C, 1)
    b = b_ref[...]                      # (C, 1)
    wg = wg_ref[...]                    # (C, 1)

    need_mask = hw_true != HWp
    if need_mask:
        lane = jax.lax.broadcasted_iota(jnp.int32, (C, HWp), 1)
        lane_mask = lane < hw_true      # hoisted out of the batch loop

    # Static unroll over the (small) per-block batch; keeps every op 2-D so the
    # P matmuls, the sublane roll and the store stay in the simple layouts.
    for bi in range(bn):
        x = x_ref[bi]                                   # (C, HWp) f32

        # Per-group mean (padded lanes are zero, so sums are exact).
        ch_sum = jnp.sum(x, axis=-1, keepdims=True)     # (C, 1)
        grp_sum = jnp.dot(P, ch_sum, preferred_element_type=jnp.float32)
        mean_c = grp_sum * (1.0 / M)                    # (C, 1)

        # Per-group unbiased std (two-pass, matches torch.std ddof=1).
        diff = x - mean_c                               # (C, HWp)
        sq = diff * diff
        if need_mask:
            sq = jnp.where(lane_mask, sq, 0.0)
        ch_sq = jnp.sum(sq, axis=-1, keepdims=True)
        grp_sq = jnp.dot(P, ch_sq, preferred_element_type=jnp.float32)
        std_c = jnp.sqrt(grp_sq * (1.0 / (M - 1)))      # (C, 1)

        # Fold the divide into a per-channel scale: gn = diff * (w/(std+eps)) + b
        inv = 1.0 / (std_c + eps)                       # exact, only (C,1)
        scale = w * inv
        gn_x = diff * scale + b                         # (C, HWp)

        # SRU gating: x1 = info*gn, x2 = (1-info)*gn  ==  select + subtract.
        rew = jax.nn.sigmoid(gn_x * wg)
        x1 = jnp.where(rew >= gate, gn_x, 0.0)
        x2 = gn_x - x1

        # Reconstruct (cross-add channel halves) as a single full-tile store:
        # out[:h] = x1[:h] + x2[h:],  out[h:] = x1[h:] + x2[:h]
        #         == x1 + roll(x2, shift=C//2, axis=0)   (C = 2h)
        o_ref[bi] = x1 + pltpu.roll(x2, shift=h, axis=0)


def _pick_bn(N, C, HWp, target_bytes=2 << 20, itemsize=4):
    """Largest divisor of N with block <= target bytes, keeping >=2 grid steps."""
    best = 1
    for bn in range(1, N + 1):
        if N % bn:
            continue
        if bn * C * HWp * itemsize > target_bytes:
            continue
        if N >= 2 and N // bn < 2:
            continue   # leave >=2 parallel steps so both v7x TCs get work
        best = bn
    return best


def sru_forward(x_nchw, weight, bias, *, group_num=16, gate_threshold=0.5,
                eps=1e-10):
    N, C, H, W = x_nchw.shape
    assert C >= group_num and C % group_num == 0 and C % 2 == 0
    HW = H * W
    HWp = max(128, ((HW + 127) // 128) * 128)   # lane-dense blocks

    x = x_nchw.reshape(N, C, HW).astype(jnp.float32)
    if HWp != HW:
        x = jnp.pad(x, ((0, 0), (0, 0), (0, HWp - HW)))

    w = weight.reshape(C, 1).astype(jnp.float32)
    b = bias.reshape(C, 1).astype(jnp.float32)
    w_gamma = w / jnp.sum(w)                     # hoisted out of the kernel

    # Group-membership matrix P[i, j] = 1 iff channels i, j share a group.
    ci = np.arange(C) // (C // group_num)
    P = jnp.asarray((ci[:, None] == ci[None, :]).astype(np.float32))

    bn = _pick_bn(N, C, HWp)
    grid = (N // bn,)
    # TODO(synk): for very large feature maps (block > ~2 MiB) tile HW with a
    # two-pass stats-then-normalize structure instead of growing the block.

    kernel = functools.partial(
        _sru_kernel, group_num=group_num, gate=gate_threshold, eps=eps,
        hw_true=HW)

    out = pl.pallas_call(
        kernel,
        out_shape=jax.ShapeDtypeStruct((N, C, HWp), jnp.float32),
        grid_spec=pltpu.PrefetchScalarGridSpec(
            num_scalar_prefetch=0,
            grid=grid,
            in_specs=[
                pl.BlockSpec((bn, C, HWp), lambda n: (n, 0, 0)),
                pl.BlockSpec((C, C), lambda n: (0, 0)),   # P, resident
                pl.BlockSpec((C, 1), lambda n: (0, 0)),   # weight
                pl.BlockSpec((C, 1), lambda n: (0, 0)),   # bias
                pl.BlockSpec((C, 1), lambda n: (0, 0)),   # w_gamma
            ],
            out_specs=pl.BlockSpec((bn, C, HWp), lambda n: (n, 0, 0)),
        ),
        compiler_params=pltpu.CompilerParams(
            dimension_semantics=("parallel",)),
    )(x, P, w, b, w_gamma)

    if HWp != HW:
        out = out[:, :, :HW]
    return out.reshape(N, C, H, W).astype(x_nchw.dtype)


def _sru_reference(x_nchw, weight, bias, *, group_num=16, gate_threshold=0.5,
                   eps=1e-10):
    """Pure-JAX mirror of the PyTorch forward, for correctness checking."""
    N, C, H, W = x_nchw.shape
    xg = x_nchw.reshape(N, group_num, -1)
    mean = jnp.mean(xg, axis=2, keepdims=True)
    std = jnp.std(xg, axis=2, keepdims=True, ddof=1)       # torch.std: unbiased
    xn = ((xg - mean) / (std + eps)).reshape(N, C, H, W)
    w = weight.reshape(1, C, 1, 1)
    b = bias.reshape(1, C, 1, 1)
    gn_x = xn * w + b
    w_gamma = (weight / jnp.sum(weight)).reshape(1, C, 1, 1)
    rew = jax.nn.sigmoid(gn_x * w_gamma)
    info = (rew >= gate_threshold).astype(gn_x.dtype)
    x1 = info * gn_x
    x2 = (1.0 - info) * gn_x
    h = C // 2
    return jnp.concatenate(
        [x1[:, :h] + x2[:, h:], x1[:, h:] + x2[:, :h]], axis=1)


if __name__ == "__main__":
    N, C, H, W = 2, 32, 16, 16
    GROUP_NUM = 16

    key = jax.random.PRNGKey(0)
    kx, kw = jax.random.split(key)
    x = jax.random.normal(kx, (N, C, H, W), dtype=jnp.float32)
    # GroupBatchnorm2d params: weight ~ randn(C,1,1), bias = zeros(C,1,1)
    weight = jax.random.normal(kw, (C, 1), dtype=jnp.float32)
    bias = jnp.zeros((C, 1), dtype=jnp.float32)

    out = sru_forward(x, weight, bias, group_num=GROUP_NUM,
                      gate_threshold=0.5, eps=1e-10)
    out = jax.block_until_ready(out)

    ref = _sru_reference(x, weight, bias, group_num=GROUP_NUM,
                         gate_threshold=0.5, eps=1e-10)
    np.testing.assert_allclose(np.asarray(out), np.asarray(ref),
                               rtol=1e-5, atol=1e-5)

    print("KERNEL_OK")
</pallas_src>

<mosaic_0001>
module attributes {stable_mosaic.version = 11 : i64} {
  func.func @_sru_kernel(%arg0: i32, %arg1: memref<1x32x256xf32, #tpu.memory_space<vmem>>, %arg2: memref<32x32xf32, #tpu.memory_space<vmem>>, %arg3: memref<32x1xf32, #tpu.memory_space<vmem>>, %arg4: memref<32x1xf32, #tpu.memory_space<vmem>>, %arg5: memref<32x1xf32, #tpu.memory_space<vmem>>, %arg6: memref<1x32x256xf32, #tpu.memory_space<vmem>>) attributes {dimension_semantics = [#tpu.dimension_semantics<parallel>], iteration_bounds = array<i64: 2>, scalar_prefetch = 0 : i64, scratch_operands = 0 : i64, tpu.core_type = #tpu.core_type<tc>, window_params = [{transform_indices = @transform_0, window_bounds = array<i64: 1, 32, 256>}, {pipeline_mode = #tpu.pipeline_mode<synchronous>, transform_indices = @transform_1, window_bounds = array<i64: 32, 32>}, {pipeline_mode = #tpu.pipeline_mode<synchronous>, transform_indices = @transform_2, window_bounds = array<i64: 32, 1>}, {pipeline_mode = #tpu.pipeline_mode<synchronous>, transform_indices = @transform_3, window_bounds = array<i64: 32, 1>}, {pipeline_mode = #tpu.pipeline_mode<synchronous>, transform_indices = @transform_4, window_bounds = array<i64: 32, 1>}, {transform_indices = @transform_5, window_bounds = array<i64: 1, 32, 256>}]} {
    %c0 = arith.constant 0 : index
    %c0_0 = arith.constant 0 : index
    %0 = vector.load %arg2[%c0, %c0_0] : memref<32x32xf32, #tpu.memory_space<vmem>>, vector<32x32xf32>
    %c0_1 = arith.constant 0 : index
    %c0_2 = arith.constant 0 : index
    %1 = vector.load %arg3[%c0_1, %c0_2] : memref<32x1xf32, #tpu.memory_space<vmem>>, vector<32x1xf32>
    %c0_3 = arith.constant 0 : index
    %c0_4 = arith.constant 0 : index
    %2 = vector.load %arg4[%c0_3, %c0_4] : memref<32x1xf32, #tpu.memory_space<vmem>>, vector<32x1xf32>
    %c0_5 = arith.constant 0 : index
    %c0_6 = arith.constant 0 : index
    %3 = vector.load %arg5[%c0_5, %c0_6] : memref<32x1xf32, #tpu.memory_space<vmem>>, vector<32x1xf32>
    %c0_7 = arith.constant 0 : index
    %c0_8 = arith.constant 0 : index
    %c0_9 = arith.constant 0 : index
    %4 = vector.load %arg1[%c0_7, %c0_8, %c0_9] : memref<1x32x256xf32, #tpu.memory_space<vmem>>, vector<1x32x256xf32>
    %5 = vector.shape_cast %4 : vector<1x32x256xf32> to vector<32x256xf32>
    %cst = arith.constant dense<0.000000e+00> : vector<32xf32>
    %6 = vector.multi_reduction <add>, %5, %cst [1] : vector<32x256xf32> to vector<32xf32>
    %7 = vector.shape_cast %6 : vector<32xf32> to vector<32x1xf32>
    %cst_10 = arith.constant dense<0.000000e+00> : vector<32x1xf32>
    %8 = tpu.matmul %0, %7, %cst_10 {dimension_numbers = #tpu.dot_dimension_numbers<[1], [0], [0], [1], [0, 0, 1, 1], [], []>} : vector<32x32xf32>, vector<32x1xf32>, vector<32x1xf32> -> vector<32x1xf32>
    %cst_11 = arith.constant 0.001953125 : f32
    %9 = vector.broadcast %cst_11 : f32 to vector<32x1xf32>
    %10 = arith.mulf %8, %9 : vector<32x1xf32>
    %11 = vector.broadcast %10 : vector<32x1xf32> to vector<32x256xf32>
    %12 = arith.subf %5, %11 : vector<32x256xf32>
    %13 = arith.mulf %12, %12 : vector<32x256xf32>
    %cst_12 = arith.constant dense<0.000000e+00> : vector<32xf32>
    %14 = vector.multi_reduction <add>, %13, %cst_12 [1] : vector<32x256xf32> to vector<32xf32>
    %15 = vector.shape_cast %14 : vector<32xf32> to vector<32x1xf32>
    %cst_13 = arith.constant dense<0.000000e+00> : vector<32x1xf32>
    %16 = tpu.matmul %0, %15, %cst_13 {dimension_numbers = #tpu.dot_dimension_numbers<[1], [0], [0], [1], [0, 0, 1, 1], [], []>} : vector<32x32xf32>, vector<32x1xf32>, vector<32x1xf32> -> vector<32x1xf32>
    %cst_14 = arith.constant 0.00195694715 : f32
    %17 = vector.broadcast %cst_14 : f32 to vector<32x1xf32>
    %18 = arith.mulf %16, %17 : vector<32x1xf32>
    %19 = math.sqrt %18 : vector<32x1xf32>
    %cst_15 = arith.constant 1.000000e-10 : f32
    %20 = vector.broadcast %cst_15 : f32 to vector<32x1xf32>
    %21 = arith.addf %19, %20 : vector<32x1xf32>
    %cst_16 = arith.constant 1.000000e+00 : f32
    %22 = vector.broadcast %cst_16 : f32 to vector<32x1xf32>
    %23 = arith.divf %22, %21 : vector<32x1xf32>
    %24 = arith.mulf %1, %23 : vector<32x1xf32>
    %25 = vector.broadcast %24 : vector<32x1xf32> to vector<32x256xf32>
    %26 = arith.mulf %12, %25 : vector<32x256xf32>
    %27 = vector.broadcast %2 : vector<32x1xf32> to vector<32x256xf32>
    %28 = arith.addf %26, %27 : vector<32x256xf32>
    %29 = vector.broadcast %3 : vector<32x1xf32> to vector<32x256xf32>
    %30 = arith.mulf %28, %29 : vector<32x256xf32>
    %31 = arith.negf %30 : vector<32x256xf32>
    %32 = math.exp %31 : vector<32x256xf32>
    %cst_17 = arith.constant 1.000000e+00 : f32
    %33 = vector.broadcast %cst_17 : f32 to vector<32x256xf32>
    %34 = arith.addf %33, %32 : vector<32x256xf32>
    %35 = arith.divf %33, %34 : vector<32x256xf32>
    %cst_18 = arith.constant 5.000000e-01 : f32
    %36 = vector.broadcast %cst_18 : f32 to vector<32x256xf32>
    %37 = arith.cmpf oge, %35, %36 : vector<32x256xf32>
    %cst_19 = arith.constant 0.000000e+00 : f32
    %38 = vector.broadcast %cst_19 : f32 to vector<32x256xf32>
    %39 = arith.select %37, %28, %38 : vector<32x256xi1>, vector<32x256xf32>
    %40 = arith.subf %28, %39 : vector<32x256xf32>
    %c16_i32 = arith.constant 16 : i32
    %41 = tpu.dynamic_rotate %40 by %c16_i32 dim 0 : vector<32x256xf32>, i32 -> vector<32x256xf32>
    %42 = arith.addf %39, %41 : vector<32x256xf32>
    %c0_20 = arith.constant 0 : index
    %c0_21 = arith.constant 0 : index
    %c0_22 = arith.constant 0 : index
    %43 = vector.load %arg6[%c0_20, %c0_21, %c0_22] : memref<1x32x256xf32, #tpu.memory_space<vmem>>, vector<1x32x256xf32>
    %44 = vector.shape_cast %43 : vector<1x32x256xf32> to vector<32x256xf32>
    %45 = vector.shape_cast %42 : vector<32x256xf32> to vector<1x32x256xf32>
    tpu.vector_store %arg6[%c0_20, %c0_21, %c0_22], %45 {strides = array<i32>} : memref<1x32x256xf32, #tpu.memory_space<vmem>>, vector<1x32x256xf32>,
    return
  }
  func.func @transform_0(%arg0: i32) -> (i32, i32, i32) {
    %c0_i32 = arith.constant 0 : i32
    %c0_i32_0 = arith.constant 0 : i32
    %c0_i32_1 = arith.constant 0 : i32
    return %arg0, %c0_i32, %c0_i32_0 : i32, i32, i32
  }
  func.func @transform_1(%arg0: i32) -> (i32, i32) {
    %c0_i32 = arith.constant 0 : i32
    %c0_i32_0 = arith.constant 0 : i32
    %c0_i32_1 = arith.constant 0 : i32
    return %c0_i32, %c0_i32_0 : i32, i32
  }
  func.func @transform_2(%arg0: i32) -> (i32, i32) {
    %c0_i32 = arith.constant 0 : i32
    %c0_i32_0 = arith.constant 0 : i32
    %c0_i32_1 = arith.constant 0 : i32
    return %c0_i32, %c0_i32_0 : i32, i32
  }
  func.func @transform_3(%arg0: i32) -> (i32, i32) {
    %c0_i32 = arith.constant 0 : i32
    %c0_i32_0 = arith.constant 0 : i32
    %c0_i32_1 = arith.constant 0 : i32
    return %c0_i32, %c0_i32_0 : i32, i32
  }
  func.func @transform_4(%arg0: i32) -> (i32, i32) {
    %c0_i32 = arith.constant 0 : i32
    %c0_i32_0 = arith.constant 0 : i32
    %c0_i32_1 = arith.constant 0 : i32
    return %c0_i32, %c0_i32_0 : i32, i32
  }
  func.func @transform_5(%arg0: i32) -> (i32, i32, i32) {
    %c0_i32 = arith.constant 0 : i32
    %c0_i32_0 = arith.constant 0 : i32
    %c0_i32_1 = arith.constant 0 : i32
    return %arg0, %c0_i32, %c0_i32_0 : i32, i32, i32
  }
}

</mosaic_0001>

<llo_original>
// kernel: tpu_custom_call.1
$region0: #{tpu_custom_call.1}
  #allocation0 [shape = 'u32[]', space=smem, size = 0x4, offset = 0x4, fixed_abs, tag = 'smem constant byte address 0x4 - core index']
  #allocation1 [shape = 'u32[144,128]{1,0:T(1,128)}', space=vmem, size = 0x12000, scoped, tag = 'internal scratch']
  %s0 = inlined_call_operand.hbm [shape: f32[2,32,256], index: 0, kind: input, shape index: {}]
  %s1 = inlined_call_operand.vmem [shape: f32[32,32], index: 1, kind: input, shape index: {}]
  %s2 = inlined_call_operand.vmem [shape: f32[32,1], index: 2, kind: input, shape index: {}]
  %s3 = inlined_call_operand.vmem [shape: f32[32,1], index: 3, kind: input, shape index: {}]
  %s4 = inlined_call_operand.vmem [shape: f32[32,1], index: 4, kind: input, shape index: {}]
  %s5 = inlined_call_operand.hbm [shape: f32[2,32,256], index: 5, kind: output, shape index: {}]
  %s6 = sld [smem:[#allocation0]]
  $region57: #{tpu_custom_call.1} parent=0
    _
  %s8 = ssub.s32 1, %s6
  %s9 = scalar_select 0, %s8, %s6
  $region1: #{tpu_custom_call.1} parent=0
    #allocation2 [shape = 'u8[65536]{0}', space=vmem, size = 0x10000, scoped, tag = 'input window, operand 0']
    #allocation3 [shape = 's32[2]{0}', space=sflag, size = 0x8, scoped, tag = 'scoped memory for tpu_custom_call.1']
    #allocation4 [shape = 's32[2]{0}', space=sflag, size = 0x8, scoped, tag = 'scoped memory for tpu_custom_call.1']
    #allocation5 [shape = 'u8[65536]{0}', space=vmem, size = 0x10000, scoped, tag = 'output window, operand 0']
    %10 = vsyncpa [#allocation3], 0
    %s11 = scalar_lea.sflag [#allocation3], 1
    %12 = vsyncpa %s11, 0
    %13 = vsyncpa [#allocation4], 0
    %s14 = scalar_lea.sflag [#allocation4], 1
    %15 = vsyncpa %s14, 0
    loop: start=0, step=1, limit=4
    $region2: #{tpu_custom_call.1} parent=1 // loop_pre_header
      _
    $region3: #{tpu_custom_call.1} parent=1 // loop_header
      %s17 = sphi 0, %s21
      %p18 = scmp.ge.s32.totalorder %s17, 4
      %s27 = sphi 0, %s29
      %s30 = sphi 0, %s27
      %s31 = sphi 0, %s30
      %s47 = sphi 0, %s31
      %s51 = sphi 0, %s51
      %s53 = sphi 0, %s51
      %s54 = sphi 0, %s53
      %s68 = sphi 0, %s54
      %s72 = sphi 0, %s72
      %s74 = sphi 0, %s72
      %s75 = sphi 0, %s74
      %s89 = sphi 0, %s75
      %s93 = sphi 0, %s93
      %s95 = sphi 0, %s93
      %s96 = sphi 0, %s95
      %s110 = sphi 0, %s96
      %s114 = sphi 0, %s114
      %s116 = sphi 0, %s114
      %s117 = sphi 0, %s116
      %s131 = sphi 0, %s117
      %s137 = sphi 0, %s139
      %s140 = sphi 0, %s137
      %s141 = sphi 0, %s140
      %s157 = sphi 0, %s141
    $region4: #{tpu_custom_call.1} parent=1 // loop_header_branch
      %20 = sbr.rel (%p18) target = $region8
    $region5: #{tpu_custom_call.1} parent=1 // loop_body
      %s22 = ssub.s32 %s17, 1
      %s23 = ssub.s32 %s17, 2
      %s24 = sadd.s32 %s17, 1
      %s25 = ssub.s32 %s17, %s24
      %p26 = scmp.eq.s32.totalorder %s25, 0
      %s28 = sadd.s32 %s27, 1
      %s29 = scalar_select %p26, %s27, %s28
      %p32 = pneg %p26
      %p33 = scmp.eq.s32.totalorder %s17, 1
      %p34 = por %p32, %p33
      %p35 = scmp.ne.s32.totalorder %s27, %s30
      %p36 = scmp.eq.s32.totalorder %s17, 0
      %p37 = por %p35, %p36
      %p38 = scmp.ne.s32.totalorder %s27, %s30
      %p39 = scmp.eq.s32.totalorder %s22, 1
      %p40 = por %p38, %p39
      %p41 = scmp.ne.s32.totalorder %s30, %s31
      %p42 = scmp.eq.s32.totalorder %s22, 0
      %p43 = por %p41, %p42
      %p44 = scmp.ne.s32.totalorder %s30, %s31
      %p45 = scmp.eq.s32.totalorder %s23, 1
      %p46 = por %p44, %p45
      %p48 = scmp.ne.s32.totalorder %s31, %s47
      %p49 = scmp.eq.s32.totalorder %s23, 0
      %p50 = por %p48, %p49
      %s52 = sadd.s32 %s51, 1
      %p55 = scmp.eq.s32.totalorder %s17, 1
      %p56 = scmp.ne.s32.totalorder %s51, %s53
      %p57 = scmp.eq.s32.totalorder %s17, 0
      %p58 = por %p56, %p57
      %p59 = scmp.ne.s32.totalorder %s51, %s53
      %p60 = scmp.eq.s32.totalorder %s22, 1
      %p61 = por %p59, %p60
      %p62 = scmp.ne.s32.totalorder %s53, %s54
      %p63 = scmp.eq.s32.totalorder %s22, 0
      %p64 = por %p62, %p63
      %p65 = scmp.ne.s32.totalorder %s53, %s54
      %p66 = scmp.eq.s32.totalorder %s23, 1
      %p67 = por %p65, %p66
      %p69 = scmp.ne.s32.totalorder %s54, %s68
      %p70 = scmp.eq.s32.totalorder %s23, 0
      %p71 = por %p69, %p70
      %s73 = sadd.s32 %s72, 1
      %p76 = scmp.eq.s32.totalorder %s17, 1
      %p77 = scmp.ne.s32.totalorder %s72, %s74
      %p78 = scmp.eq.s32.totalorder %s17, 0
      %p79 = por %p77, %p78
      %p80 = scmp.ne.s32.totalorder %s72, %s74
      %p81 = scmp.eq.s32.totalorder %s22, 1
      %p82 = por %p80, %p81
      %p83 = scmp.ne.s32.totalorder %s74, %s75
      %p84 = scmp.eq.s32.totalorder %s22, 0
      %p85 = por %p83, %p84
      %p86 = scmp.ne.s32.totalorder %s74, %s75
      %p87 = scmp.eq.s32.totalorder %s23, 1
      %p88 = por %p86, %p87
      %p90 = scmp.ne.s32.totalorder %s75, %s89
      %p91 = scmp.eq.s32.totalorder %s23, 0
      %p92 = por %p90, %p91
      %s94 = sadd.s32 %s93, 1
      %p97 = scmp.eq.s32.totalorder %s17, 1
      %p98 = scmp.ne.s32.totalorder %s93, %s95
      %p99 = scmp.eq.s32.totalorder %s17, 0
      %p100 = por %p98, %p99
      %p101 = scmp.ne.s32.totalorder %s93, %s95
      %p102 = scmp.eq.s32.totalorder %s22, 1
      %p103 = por %p101, %p102
      %p104 = scmp.ne.s32.totalorder %s95, %s96
      %p105 = scmp.eq.s32.totalorder %s22, 0
      %p106 = por %p104, %p105
      %p107 = scmp.ne.s32.totalorder %s95, %s96
      %p108 = scmp.eq.s32.totalorder %s23, 1
      %p109 = por %p107, %p108
      %p111 = scmp.ne.s32.totalorder %s96, %s110
      %p112 = scmp.eq.s32.totalorder %s23, 0
      %p113 = por %p111, %p112
      %s115 = sadd.s32 %s114, 1
      %p118 = scmp.eq.s32.totalorder %s17, 1
      %p119 = scmp.ne.s32.totalorder %s114, %s116
      %p120 = scmp.eq.s32.totalorder %s17, 0
      %p121 = por %p119, %p120
      %p122 = scmp.ne.s32.totalorder %s114, %s116
      %p123 = scmp.eq.s32.totalorder %s22, 1
      %p124 = por %p122, %p123
      %p125 = scmp.ne.s32.totalorder %s116, %s117
      %p126 = scmp.eq.s32.totalorder %s22, 0
      %p127 = por %p125, %p126
      %p128 = scmp.ne.s32.totalorder %s116, %s117
      %p129 = scmp.eq.s32.totalorder %s23, 1
      %p130 = por %p128, %p129
      %p132 = scmp.ne.s32.totalorder %s117, %s131
      %p133 = scmp.eq.s32.totalorder %s23, 0
      %p134 = por %p132, %p133
      %s135 = ssub.s32 %s17, %s24
      %p136 = scmp.eq.s32.totalorder %s135, 0
      %s138 = sadd.s32 %s137, 1
      %s139 = scalar_select %p136, %s137, %s138
      %p142 = pneg %p136
      %p143 = scmp.eq.s32.totalorder %s17, 1
      %p144 = por %p142, %p143
      %p145 = scmp.ne.s32.totalorder %s137, %s140
      %p146 = scmp.eq.s32.totalorder %s17, 0
      %p147 = por %p145, %p146
      %p148 = scmp.ne.s32.totalorder %s137, %s140
      %p149 = scmp.eq.s32.totalorder %s22, 1
      %p150 = por %p148, %p149
      %p151 = scmp.ne.s32.totalorder %s140, %s141
      %p152 = scmp.eq.s32.totalorder %s22, 0
      %p153 = por %p151, %p152
      %p154 = scmp.ne.s32.totalorder %s140, %s141
      %p155 = scmp.eq.s32.totalorder %s23, 1
      %p156 = por %p154, %p155
      %p158 = scmp.ne.s32.totalorder %s141, %s157
      %p159 = scmp.eq.s32.totalorder %s23, 0
      %p160 = por %p158, %p159
      %p161 = scmp.le.s32.totalorder 1, %s17
      %p162 = scmp.lt.s32.totalorder %s17, 3
      %p163 = pnand %p161, %p162
      %p164 = pneg %p163
      // Predicated region
      $region9: #{tpu_custom_call.1} parent=5 // pred_check
        _
      $region10: #{tpu_custom_call.1} parent=5 // pred_check_branch
        %166 = sbr.rel (%p163) target = $region12
      $region11: #{tpu_custom_call.1} parent=5 // pred_region
        %s167 = ssub.s32 %s17, 1
        // Predicated region
        $region13: #{tpu_custom_call.1} parent=11 // pred_check
          %p168 = pneg %p64
        $region14: #{tpu_custom_call.1} parent=11 // pred_check_branch
          %170 = sbr.rel (%p168) target = $region16
        $region15: #{tpu_custom_call.1} parent=11 // pred_region
          _
        $region16: #{tpu_custom_call.1} parent=11 // pred_fallthru
          _
        // Predicated region
        $region17: #{tpu_custom_call.1} parent=11 // pred_check
          %p171 = pneg %p85
        $region18: #{tpu_custom_call.1} parent=11 // pred_check_branch
          %173 = sbr.rel (%p171) target = $region20
        $region19: #{tpu_custom_call.1} parent=11 // pred_region
          _
        $region20: #{tpu_custom_call.1} parent=11 // pred_fallthru
          _
        // Predicated region
        $region21: #{tpu_custom_call.1} parent=11 // pred_check
          %p174 = pneg %p106
        $region22: #{tpu_custom_call.1} parent=11 // pred_check_branch
          %176 = sbr.rel (%p174) target = $region24
        $region23: #{tpu_custom_call.1} parent=11 // pred_region
          _
        $region24: #{tpu_custom_call.1} parent=11 // pred_fallthru
          _
        // Predicated region
        $region25: #{tpu_custom_call.1} parent=11 // pred_check
          %p177 = pneg %p127
        $region26: #{tpu_custom_call.1} parent=11 // pred_check_branch
          %179 = sbr.rel (%p177) target = $region28
        $region27: #{tpu_custom_call.1} parent=11 // pred_region
          _
        $region28: #{tpu_custom_call.1} parent=11 // pred_fallthru
          _
      $region12: #{tpu_custom_call.1} parent=5 // pred_fallthru
        _
      %p180 = scmp.lt.s32.totalorder %s17, 2
      // Predicated region
      $region29: #{tpu_custom_call.1} parent=5 // pred_check
        %p181 = pneg %p180
      $region30: #{tpu_custom_call.1} parent=5 // pred_check_branch
        %183 = sbr.rel (%p181) target = $region32
      $region31: #{tpu_custom_call.1} parent=5 // pred_region
        // Predicated region
        $region33: #{tpu_custom_call.1} parent=31 // pred_check
          %p184 = pneg %p37
        $region34: #{tpu_custom_call.1} parent=31 // pred_check_branch
          %186 = sbr.rel (%p184) target = $region36
        $region35: #{tpu_custom_call.1} parent=31 // pred_region
          %s187 = sand.u32 %s27, 1
          %s188 = scalar_lea.sflag [#allocation3], %s187
          %s189 = sand.u32 %s27, 1
          %s190 = smul.addr %s189, 64
          %s191 = scalar_lea.vmem [#allocation2], %s190
          %s193 = ssub.s32 1024, 1024
          %194 = vsyncadd %s188, %s193
          %s195 = smul.addr %s17, 8
          %s196 = smul.addr %s195, 128
          %s197 = scalar_lea.hbm %s0, %s196
          %s198 = sshll.u32 %s191, 4
          %s199 = int_to_ptr.vmem [resolvable:$true] %s198
          %204 = dma.hbm_to_vmem [thread:$0]  %s197, 1024, %s199, %s188, 256, 256, 16
        $region36: #{tpu_custom_call.1} parent=31 // pred_fallthru
          _
      $region32: #{tpu_custom_call.1} parent=5 // pred_fallthru
        _
      %p205 = scmp.le.s32.totalorder 1, %s17
      %p206 = scmp.lt.s32.totalorder %s17, 3
      %p207 = pnand %p205, %p206
      %p208 = pneg %p207
      // Predicated region
      $region37: #{tpu_custom_call.1} parent=5 // pred_check
        _
      $region38: #{tpu_custom_call.1} parent=5 // pred_check_branch
        %210 = sbr.rel (%p207) target = $region40
      $region39: #{tpu_custom_call.1} parent=5 // pred_region
        %s211 = ssub.s32 %s17, 1
        %s212 = sand.u32 %s30, 1
        %s213 = scalar_lea.sflag [#allocation3], %s212
        %s214 = sand.u32 %s30, 1
        %s215 = smul.addr %s214, 64
        %s216 = scalar_lea.vmem [#allocation2], %s215
        // Predicated region
        $region41: #{tpu_custom_call.1} parent=39 // pred_check
          %p217 = pneg %p43
        $region42: #{tpu_custom_call.1} parent=39 // pred_check_branch
          %219 = sbr.rel (%p217) target = $region44
        $region43: #{tpu_custom_call.1} parent=39 // pred_region
          %220 = dma.done %s213, 1024
        $region44: #{tpu_custom_call.1} parent=39 // pred_fallthru
          _
        %s221 = sand.u32 %s30, 1
        %s222 = scalar_lea.sflag [#allocation3], %s221
        %s223 = sand.u32 %s30, 1
        %s224 = smul.addr %s223, 64
        %s225 = scalar_lea.vmem [#allocation2], %s224
        %p226 = pneg %p43
        %p227 = pneg %p40
        %p228 = pneg %p64
        %p229 = pneg %p61
        %p230 = pneg %p85
        %p231 = pneg %p82
        %p232 = pneg %p106
        %p233 = pneg %p103
        %p234 = pneg %p127
        %p235 = pneg %p124
        %p236 = pneg %p153
        %p237 = pneg %p150
        %s238 = sand.u32 %s140, 1
        %s239 = scalar_lea.sflag [#allocation4], %s238
        %s240 = sand.u32 %s140, 1
        %s241 = smul.addr %s240, 64
        %s242 = scalar_lea.vmem [#allocation5], %s241
        %v243 = vld [vmem:[%s1] sm:$0xff]
        %v244 = vld [vmem:[%s1 + $0x8] sm:$0xff]
        %v245 = vld [vmem:[%s1 + $0x10] sm:$0xff]
        %v246 = vld [vmem:[%s1 + $0x18] sm:$0xff]
        %v247 = vld [vmem:[%s2] sm:$0xff]
        %v248 = vld [vmem:[%s2 + $0x8] sm:$0xff]
        %v249 = vld [vmem:[%s2 + $0x10] sm:$0xff]
        %v250 = vld [vmem:[%s2 + $0x18] sm:$0xff]
        %v251 = vld [vmem:[%s3] sm:$0xff]
        %v252 = vld [vmem:[%s3 + $0x8] sm:$0xff]
        %v253 = vld [vmem:[%s3 + $0x10] sm:$0xff]
        %v254 = vld [vmem:[%s3 + $0x18] sm:$0xff]
        %v255 = vld [vmem:[%s4] sm:$0xff]
        %v256 = vld [vmem:[%s4 + $0x8] sm:$0xff]
        %v257 = vld [vmem:[%s4 + $0x10] sm:$0xff]
        %v258 = vld [vmem:[%s4 + $0x18] sm:$0xff]
        %v259 = vld [vmem:[%s216] sm:$0xff]
        %v260 = vld [vmem:[%s216 + $0x8] sm:$0xff]
        %v261 = vld [vmem:[%s216 + $0x10] sm:$0xff]
        %v262 = vld [vmem:[%s216 + $0x18] sm:$0xff]
        %v263 = vld [vmem:[%s216 + $0x20] sm:$0xff]
        %v264 = vld [vmem:[%s216 + $0x28] sm:$0xff]
        %v265 = vld [vmem:[%s216 + $0x30] sm:$0xff]
        %v266 = vld [vmem:[%s216 + $0x38] sm:$0xff]
        %v267 = vadd.f32 %v259, %v260
        %268 = vadd.xlane.f32.xlu0 %v267
        %v269 = vpop.xlane.xlu0 %268
        %v270 = vadd.f32 %v261, %v262
        %271 = vadd.xlane.f32.xlu0 %v270
        %v272 = vpop.xlane.xlu0 %271
        %v273 = vadd.f32 %v263, %v264
        %274 = vadd.xlane.f32.xlu0 %v273
        %v275 = vpop.xlane.xlu0 %274
        %v276 = vadd.f32 %v265, %v266
        %277 = vadd.xlane.f32.xlu0 %v276
        %v278 = vpop.xlane.xlu0 %277
        %vm279 = vcmask 261120
        %v281 = vsel %vm279, %v243, 0
        %v284 = vsel %vm279, %v244, 0
        %v287 = vsel %vm279, %v245, 0
        %v290 = vsel %vm279, %v246, 0
        %292 = vmatprep.subr.mxu0 0.0
        %293 = vmatpush1.msra.mxu0 0.0
        %294 = vmatprep.subr.mxu0 0.0
        %295 = vmatpush1.msra.mxu0 0.0
        %296 = vmatprep.subr.mxu0 0.0
        %297 = vmatpush1.msra.mxu0 0.0
        %298 = vmatprep.subr.mxu0 0.0
        %299 = vmatpush1.msra.mxu0 0.0
        %300 = vmatprep.subr.mxu0 0.0
        %301 = vmatpush1.msra.mxu0 0.0
        %302 = vmatprep.subr.mxu0 0.0
        %303 = vmatpush1.msra.mxu0 0.0
        %304 = vmatprep.subr.mxu0 0.0
        %305 = vmatpush1.msra.mxu0 0.0
        %306 = vmatprep.subr.mxu0 0.0
        %307 = vmatpush1.msra.mxu0 0.0
        %308 = vmatprep.subr.mxu0 0.0
        %309 = vmatpush1.msra.mxu0 0.0
        %310 = vmatprep.subr.mxu0 0.0
        %311 = vmatpush1.msra.mxu0 0.0
        %312 = vmatprep.subr.mxu0 0.0
        %313 = vmatpush1.msra.mxu0 0.0
        %314 = vmatprep.subr.mxu0 0.0
        %315 = vmatpush1.msra.mxu0 0.0
        %316 = vmatprep.subr.mxu0 0.0
        %317 = vmatpush1.msra.mxu0 %v278
        %318 = vmatprep.subr.mxu0 0.0
        %319 = vmatpush1.msra.mxu0 %v275
        %320 = vmatprep.subr.mxu0 0.0
        %321 = vmatpush1.msra.mxu0 %v272
        %322 = vmatprep.subr.mxu0 0.0
        %323 = vmatpush1.msra.mxu0 %v269
        %324 = vmatprep.subr.mxu0 0.0
        %325 = vmatpush2.msra.mxu0 0.0
        %326 = vmatprep.subr.mxu0 0.0
        %327 = vmatpush2.msra.mxu0 0.0
        %328 = vmatprep.subr.mxu0 0.0
        %329 = vmatpush2.msra.mxu0 0.0
        %330 = vmatprep.subr.mxu0 0.0
        %331 = vmatpush2.msra.mxu0 0.0
        %332 = vmatprep.subr.mxu0 0.0
        %333 = vmatpush2.msra.mxu0 0.0
        %334 = vmatprep.subr.mxu0 0.0
        %335 = vmatpush2.msra.mxu0 0.0
        %336 = vmatprep.subr.mxu0 0.0
        %337 = vmatpush2.msra.mxu0 0.0
        %338 = vmatprep.subr.mxu0 0.0
        %339 = vmatpush2.msra.mxu0 0.0
        %340 = vmatprep.subr.mxu0 0.0
        %341 = vmatpush2.msra.mxu0 0.0
        %342 = vmatprep.subr.mxu0 0.0
        %343 = vmatpush2.msra.mxu0 0.0
        %344 = vmatprep.subr.mxu0 0.0
        %345 = vmatpush2.msra.mxu0 0.0
        %346 = vmatprep.subr.mxu0 0.0
        %347 = vmatpush2.msra.mxu0 0.0
        %348 = vmatprep.subr.mxu0 0.0
        %349 = vmatpush2.msra.mxu0 0.0
        %350 = vmatprep.subr.mxu0 0.0
        %351 = vmatpush2.msra.mxu0 0.0
        %352 = vmatprep.subr.mxu0 0.0
        %353 = vmatpush2.msra.mxu0 0.0
        %354 = vmatprep.subr.mxu0 0.0
        %355 = vmatpush2.msra.mxu0 0.0
        %356 = vmatprep.mubr.f32.mxu0 0.0
        %357 = vmatmul.mubr.f32.gmra.mxu0 %v281
        %v358 = vpop.f32.mrf.mxu0
        %v359 = vadd.f32 0.0, %v358
        %v360 = vpop.f32.mrf.mxu0
        %361 = vmatprep.mubr.f32.mxu0 0.0
        %362 = vmatmul.mubr.f32.gmra.mxu0 %v284
        %v363 = vpop.f32.mrf.mxu0
        %v364 = vadd.f32 0.0, %v363
        %v365 = vpop.f32.mrf.mxu0
        %366 = vmatprep.mubr.f32.mxu0 0.0
        %367 = vmatmul.mubr.f32.gmra.mxu0 %v287
        %v368 = vpop.f32.mrf.mxu0
        %v369 = vadd.f32 0.0, %v368
        %v370 = vpop.f32.mrf.mxu0
        %371 = vmatprep.mubr.f32.mxu0 0.0
        %372 = vmatmul.mubr.f32.gmra.mxu0 %v290
        %v373 = vpop.f32.mrf.mxu0
        %v374 = vadd.f32 0.0, %v373
        %v375 = vpop.f32.mrf.mxu0
        %376 = vdwg.mxu0
        %v377 = vmul.f32 %v359, 0.001953125
        %v378 = vmul.f32 %v364, 0.001953125
        %v379 = vmul.f32 %v369, 0.001953125
        %v380 = vmul.f32 %v374, 0.001953125
        %382 = vset.pattern.permute.xlu0 0
        %383 = vperm.xlu0 %382, %v377
        %v384 = vpop.permute.xlu0 %383
        %387 = vset.pattern.permute.xlu0 0
        %388 = vperm.xlu0 %387, %v378
        %v389 = vpop.permute.xlu0 %388
        %392 = vset.pattern.permute.xlu0 0
        %393 = vperm.xlu0 %392, %v379
        %v394 = vpop.permute.xlu0 %393
        %397 = vset.pattern.permute.xlu0 0
        %398 = vperm.xlu0 %397, %v380
        %v399 = vpop.permute.xlu0 %398
        %v401 = vsub.f32 %v259, %v384
        %v402 = vsub.f32 %v260, %v384
        %v403 = vsub.f32 %v261, %v389
        %v404 = vsub.f32 %v262, %v389
        %v405 = vsub.f32 %v263, %v394
        %v406 = vsub.f32 %v264, %v394
        %v407 = vsub.f32 %v265, %v399
        %v408 = vsub.f32 %v266, %v399
        %v409 = vmul.f32 %v401, %v401
        %v410 = vmul.f32 %v402, %v402
        %v411 = vmul.f32 %v403, %v403
        %v412 = vmul.f32 %v404, %v404
        %v413 = vmul.f32 %v405, %v405
        %v414 = vmul.f32 %v406, %v406
        %v415 = vmul.f32 %v407, %v407
        %v416 = vmul.f32 %v408, %v408
        %v417 = vadd.f32 %v409, %v410
        %418 = vadd.xlane.f32.xlu0 %v417
        %v419 = vpop.xlane.xlu0 %418
        %v420 = vadd.f32 %v411, %v412
        %421 = vadd.xlane.f32.xlu0 %v420
        %v422 = vpop.xlane.xlu0 %421
        %v423 = vadd.f32 %v413, %v414
        %424 = vadd.xlane.f32.xlu0 %v423
        %v425 = vpop.xlane.xlu0 %424
        %v426 = vadd.f32 %v415, %v416
        %427 = vadd.xlane.f32.xlu0 %v426
        %v428 = vpop.xlane.xlu0 %427
        %429 = vmatprep.subr.mxu0 0.0
        %430 = vmatpush1.msra.mxu0 0.0
        %431 = vmatprep.subr.mxu0 0.0
        %432 = vmatpush1.msra.mxu0 0.0
        %433 = vmatprep.subr.mxu0 0.0
        %434 = vmatpush1.msra.mxu0 0.0
        %435 = vmatprep.subr.mxu0 0.0
        %436 = vmatpush1.msra.mxu0 0.0
        %437 = vmatprep.subr.mxu0 0.0
        %438 = vmatpush1.msra.mxu0 0.0
        %439 = vmatprep.subr.mxu0 0.0
        %440 = vmatpush1.msra.mxu0 0.0
        %441 = vmatprep.subr.mxu0 0.0
        %442 = vmatpush1.msra.mxu0 0.0
        %443 = vmatprep.subr.mxu0 0.0
        %444 = vmatpush1.msra.mxu0 0.0
        %445 = vmatprep.subr.mxu0 0.0
        %446 = vmatpush1.msra.mxu0 0.0
        %447 = vmatprep.subr.mxu0 0.0
        %448 = vmatpush1.msra.mxu0 0.0
        %449 = vmatprep.subr.mxu0 0.0
        %450 = vmatpush1.msra.mxu0 0.0
        %451 = vmatprep.subr.mxu0 0.0
        %452 = vmatpush1.msra.mxu0 0.0
        %453 = vmatprep.subr.mxu0 0.0
        %454 = vmatpush1.msra.mxu0 %v428
        %455 = vmatprep.subr.mxu0 0.0
        %456 = vmatpush1.msra.mxu0 %v425
        %457 = vmatprep.subr.mxu0 0.0
        %458 = vmatpush1.msra.mxu0 %v422
        %459 = vmatprep.subr.mxu0 0.0
        %460 = vmatpush1.msra.mxu0 %v419
        %461 = vmatprep.subr.mxu0 0.0
        %462 = vmatpush2.msra.mxu0 0.0
        %463 = vmatprep.subr.mxu0 0.0
        %464 = vmatpush2.msra.mxu0 0.0
        %465 = vmatprep.subr.mxu0 0.0
        %466 = vmatpush2.msra.mxu0 0.0
        %467 = vmatprep.subr.mxu0 0.0
        %468 = vmatpush2.msra.mxu0 0.0
        %469 = vmatprep.subr.mxu0 0.0
        %470 = vmatpush2.msra.mxu0 0.0
        %471 = vmatprep.subr.mxu0 0.0
        %472 = vmatpush2.msra.mxu0 0.0
        %473 = vmatprep.subr.mxu0 0.0
        %474 = vmatpush2.msra.mxu0 0.0
        %475 = vmatprep.subr.mxu0 0.0
        %476 = vmatpush2.msra.mxu0 0.0
        %477 = vmatprep.subr.mxu0 0.0
        %478 = vmatpush2.msra.mxu0 0.0
        %479 = vmatprep.subr.mxu0 0.0
        %480 = vmatpush2.msra.mxu0 0.0
        %481 = vmatprep.subr.mxu0 0.0
        %482 = vmatpush2.msra.mxu0 0.0
        %483 = vmatprep.subr.mxu0 0.0
        %484 = vmatpush2.msra.mxu0 0.0
        %485 = vmatprep.subr.mxu0 0.0
        %486 = vmatpush2.msra.mxu0 0.0
        %487 = vmatprep.subr.mxu0 0.0
        %488 = vmatpush2.msra.mxu0 0.0
        %489 = vmatprep.subr.mxu0 0.0
        %490 = vmatpush2.msra.mxu0 0.0
        %491 = vmatprep.subr.mxu0 0.0
        %492 = vmatpush2.msra.mxu0 0.0
        %493 = vmatprep.mubr.f32.mxu0 0.0
        %494 = vmatmul.mubr.f32.gmra.mxu0 %v281
        %v495 = vpop.f32.mrf.mxu0
        %v496 = vadd.f32 0.0, %v495
        %v497 = vpop.f32.mrf.mxu0
        %498 = vmatprep.mubr.f32.mxu0 0.0
        %499 = vmatmul.mubr.f32.gmra.mxu0 %v284
        %v500 = vpop.f32.mrf.mxu0
        %v501 = vadd.f32 0.0, %v500
        %v502 = vpop.f32.mrf.mxu0
        %503 = vmatprep.mubr.f32.mxu0 0.0
        %504 = vmatmul.mubr.f32.gmra.mxu0 %v287
        %v505 = vpop.f32.mrf.mxu0
        %v506 = vadd.f32 0.0, %v505
        %v507 = vpop.f32.mrf.mxu0
        %508 = vmatprep.mubr.f32.mxu0 0.0
        %509 = vmatmul.mubr.f32.gmra.mxu0 %v290
        %v510 = vpop.f32.mrf.mxu0
        %v511 = vadd.f32 0.0, %v510
        %v512 = vpop.f32.mrf.mxu0
        %513 = vdwg.mxu0
        %v514 = vmul.f32 %v496, 0.0019569471
        %v515 = vmul.f32 %v501, 0.0019569471
        %v516 = vmul.f32 %v506, 0.0019569471
        %v517 = vmul.f32 %v511, 0.0019569471
        %v518 = vrsqrt.pop %v514
        %v519 = vmul.f32 %v514, %v518
        %vm520 = vcmp.eq.f32.partialorder %v514, inf
        %v521 = vsel %vm520, %v514, %v519
        %vm522 = vcmp.eq.f32.partialorder %v514, 0.0
        %v523 = vand.u32 %v514, 2147483648
        %v524 = vsel %vm522, %v523, %v521
        %v525 = vrsqrt.pop %v515
        %v526 = vmul.f32 %v515, %v525
        %vm527 = vcmp.eq.f32.partialorder %v515, inf
        %v528 = vsel %vm527, %v515, %v526
        %vm529 = vcmp.eq.f32.partialorder %v515, 0.0
        %v530 = vand.u32 %v515, 2147483648
        %v531 = vsel %vm529, %v530, %v528
        %v532 = vrsqrt.pop %v516
        %v533 = vmul.f32 %v516, %v532
        %vm534 = vcmp.eq.f32.partialorder %v516, inf
        %v535 = vsel %vm534, %v516, %v533
        %vm536 = vcmp.eq.f32.partialorder %v516, 0.0
        %v537 = vand.u32 %v516, 2147483648
        %v538 = vsel %vm536, %v537, %v535
        %v539 = vrsqrt.pop %v517
        %v540 = vmul.f32 %v517, %v539
        %vm541 = vcmp.eq.f32.partialorder %v517, inf
        %v542 = vsel %vm541, %v517, %v540
        %vm543 = vcmp.eq.f32.partialorder %v517, 0.0
        %v544 = vand.u32 %v517, 2147483648
        %v545 = vsel %vm543, %v544, %v542
        %v546 = vadd.f32 %v524, 1e-10
        %v547 = vadd.f32 %v531, 1e-10
        %v548 = vadd.f32 %v538, 1e-10
        %v549 = vadd.f32 %v545, 1e-10
        %v550 = vrcp.pop %v546
        %v551 = vmul.f32 1.0, %v550
        %v552 = vrcp.pop %v547
        %v553 = vmul.f32 1.0, %v552
        %v554 = vrcp.pop %v548
        %v555 = vmul.f32 1.0, %v554
        %v556 = vrcp.pop %v549
        %v557 = vmul.f32 1.0, %v556
        %v558 = vmul.f32 %v247, %v551
        %v559 = vmul.f32 %v248, %v553
        %v560 = vmul.f32 %v249, %v555
        %v561 = vmul.f32 %v250, %v557
        %563 = vset.pattern.permute.xlu0 0
        %564 = vperm.xlu0 %563, %v558
        %v565 = vpop.permute.xlu0 %564
        %568 = vset.pattern.permute.xlu0 0
        %569 = vperm.xlu0 %568, %v559
        %v570 = vpop.permute.xlu0 %569
        %573 = vset.pattern.permute.xlu0 0
        %574 = vperm.xlu0 %573, %v560
        %v575 = vpop.permute.xlu0 %574
        %578 = vset.pattern.permute.xlu0 0
        %579 = vperm.xlu0 %578, %v561
        %v580 = vpop.permute.xlu0 %579
        %v582 = vmul.f32 %v401, %v565
        %v583 = vmul.f32 %v402, %v565
        %v584 = vmul.f32 %v403, %v570
        %v585 = vmul.f32 %v404, %v570
        %v586 = vmul.f32 %v405, %v575
        %v587 = vmul.f32 %v406, %v575
        %v588 = vmul.f32 %v407, %v580
        %v589 = vmul.f32 %v408, %v580
        %591 = vset.pattern.permute.xlu0 0
        %592 = vperm.xlu0 %591, %v251
        %v593 = vpop.permute.xlu0 %592
        %596 = vset.pattern.permute.xlu0 0
        %597 = vperm.xlu0 %596, %v252
        %v598 = vpop.permute.xlu0 %597
        %601 = vset.pattern.permute.xlu0 0
        %602 = vperm.xlu0 %601, %v253
        %v603 = vpop.permute.xlu0 %602
        %606 = vset.pattern.permute.xlu0 0
        %607 = vperm.xlu0 %606, %v254
        %v608 = vpop.permute.xlu0 %607
        %v610 = vadd.f32 %v582, %v593
        %v611 = vadd.f32 %v583, %v593
        %v612 = vadd.f32 %v584, %v598
        %v613 = vadd.f32 %v585, %v598
        %v614 = vadd.f32 %v586, %v603
        %v615 = vadd.f32 %v587, %v603
        %v616 = vadd.f32 %v588, %v608
        %v617 = vadd.f32 %v589, %v608
        %619 = vset.pattern.permute.xlu0 0
        %620 = vperm.xlu0 %619, %v255
        %v621 = vpop.permute.xlu0 %620
        %624 = vset.pattern.permute.xlu0 0
        %625 = vperm.xlu0 %624, %v256
        %v626 = vpop.permute.xlu0 %625
        %629 = vset.pattern.permute.xlu0 0
        %630 = vperm.xlu0 %629, %v257
        %v631 = vpop.permute.xlu0 %630
        %634 = vset.pattern.permute.xlu0 0
        %635 = vperm.xlu0 %634, %v258
        %v636 = vpop.permute.xlu0 %635
        %v638 = vmul.f32 %v610, %v621
        %v639 = vmul.f32 %v611, %v621
        %v640 = vmul.f32 %v612, %v626
        %v641 = vmul.f32 %v613, %v626
        %v642 = vmul.f32 %v614, %v631
        %v643 = vmul.f32 %v615, %v631
        %v644 = vmul.f32 %v616, %v636
        %v645 = vmul.f32 %v617, %v636
        %v646 = vxor.u32 %v638, 2147483648
        %v647 = vxor.u32 %v639, 2147483648
        %v648 = vxor.u32 %v640, 2147483648
        %v649 = vxor.u32 %v641, 2147483648
        %v650 = vxor.u32 %v642, 2147483648
        %v651 = vxor.u32 %v643, 2147483648
        %v652 = vxor.u32 %v644, 2147483648
        %v653 = vxor.u32 %v645, 2147483648
        %v654 = vmul.f32 %v646, 1.442695
        %v655 = vpow.pop %v654
        %v656 = vmul.f32 %v647, 1.442695
        %v657 = vpow.pop %v656
        %v658 = vmul.f32 %v648, 1.442695
        %v659 = vpow.pop %v658
        %v660 = vmul.f32 %v649, 1.442695
        %v661 = vpow.pop %v660
        %v662 = vmul.f32 %v650, 1.442695
        %v663 = vpow.pop %v662
        %v664 = vmul.f32 %v651, 1.442695
        %v665 = vpow.pop %v664
        %v666 = vmul.f32 %v652, 1.442695
        %v667 = vpow.pop %v666
        %v668 = vmul.f32 %v653, 1.442695
        %v669 = vpow.pop %v668
        %v670 = vadd.f32 %v655, 1.0
        %v671 = vadd.f32 %v657, 1.0
        %v672 = vadd.f32 %v659, 1.0
        %v673 = vadd.f32 %v661, 1.0
        %v674 = vadd.f32 %v663, 1.0
        %v675 = vadd.f32 %v665, 1.0
        %v676 = vadd.f32 %v667, 1.0
        %v677 = vadd.f32 %v669, 1.0
        %v678 = vrcp.pop %v670
        %v679 = vmul.f32 1.0, %v678
        %v680 = vrcp.pop %v671
        %v681 = vmul.f32 1.0, %v680
        %v682 = vrcp.pop %v672
        %v683 = vmul.f32 1.0, %v682
        %v684 = vrcp.pop %v673
        %v685 = vmul.f32 1.0, %v684
        %v686 = vrcp.pop %v674
        %v687 = vmul.f32 1.0, %v686
        %v688 = vrcp.pop %v675
        %v689 = vmul.f32 1.0, %v688
        %v690 = vrcp.pop %v676
        %v691 = vmul.f32 1.0, %v690
        %v692 = vrcp.pop %v677
        %v693 = vmul.f32 1.0, %v692
        %vm694 = vcmp.ge.f32.partialorder %v679, 0.5
        %vm695 = vcmp.ge.f32.partialorder %v681, 0.5
        %vm696 = vcmp.ge.f32.partialorder %v683, 0.5
        %vm697 = vcmp.ge.f32.partialorder %v685, 0.5
        %vm698 = vcmp.ge.f32.partialorder %v687, 0.5
        %vm699 = vcmp.ge.f32.partialorder %v689, 0.5
        %vm700 = vcmp.ge.f32.partialorder %v691, 0.5
        %vm701 = vcmp.ge.f32.partialorder %v693, 0.5
        %v702 = vsel %vm694, %v610, 0.0
        %v703 = vsel %vm695, %v611, 0.0
        %v704 = vsel %vm696, %v612, 0.0
        %v705 = vsel %vm697, %v613, 0.0
        %v706 = vsel %vm698, %v614, 0.0
        %v707 = vsel %vm699, %v615, 0.0
        %v708 = vsel %vm700, %v616, 0.0
        %v709 = vsel %vm701, %v617, 0.0
        %v710 = vsub.f32 %v610, %v702
        %v711 = vsub.f32 %v611, %v703
        %v712 = vsub.f32 %v612, %v704
        %v713 = vsub.f32 %v613, %v705
        %v714 = vsub.f32 %v614, %v706
        %v715 = vsub.f32 %v615, %v707
        %v716 = vsub.f32 %v616, %v708
        %v717 = vsub.f32 %v617, %v709
        %v718 = vadd.f32 %v702, %v714
        %v719 = vadd.f32 %v703, %v715
        %v720 = vadd.f32 %v704, %v716
        %v721 = vadd.f32 %v705, %v717
        %v722 = vadd.f32 %v706, %v710
        %v723 = vadd.f32 %v707, %v711
        %v724 = vadd.f32 %v708, %v712
        %v725 = vadd.f32 %v709, %v713
        %726 = vst [vmem:[%s242] sm:$0xff] %v718
        %727 = vst [vmem:[%s242 + $0x8] sm:$0xff] %v719
        %728 = vst [vmem:[%s242 + $0x10] sm:$0xff] %v720
        %729 = vst [vmem:[%s242 + $0x18] sm:$0xff] %v721
        %730 = vst [vmem:[%s242 + $0x20] sm:$0xff] %v722
        %731 = vst [vmem:[%s242 + $0x28] sm:$0xff] %v723
        %732 = vst [vmem:[%s242 + $0x30] sm:$0xff] %v724
        %733 = vst [vmem:[%s242 + $0x38] sm:$0xff] %v725
        %s734 = sand.u32 %s140, 1
        %s735 = scalar_lea.sflag [#allocation4], %s734
        %s736 = sand.u32 %s140, 1
        %s737 = smul.addr %s736, 64
        %s738 = scalar_lea.vmem [#allocation5], %s737
        // Predicated region
        $region45: #{tpu_custom_call.1} parent=39 // pred_check
          %p739 = pneg %p150
        $region46: #{tpu_custom_call.1} parent=39 // pred_check_branch
          %741 = sbr.rel (%p739) target = $region48
        $region47: #{tpu_custom_call.1} parent=39 // pred_region
          %s743 = ssub.s32 1024, 1024
          %744 = vsyncadd %s735, %s743
          %s745 = smul.addr %s22, 8
          %s746 = smul.addr %s745, 128
          %s747 = scalar_lea.hbm %s5, %s746
          %s748 = sshll.u32 %s738, 4
          %s749 = int_to_ptr.vmem [resolvable:$true] %s748
          %754 = dma.vmem_to_hbm [thread:$0]  %s749, 1024, %s747, %s735, 256, 256, 16
        $region48: #{tpu_custom_call.1} parent=39 // pred_fallthru
          _
      $region40: #{tpu_custom_call.1} parent=5 // pred_fallthru
        _
      %p755 = scmp.le.s32.totalorder 2, %s17
      // Predicated region
      $region49: #{tpu_custom_call.1} parent=5 // pred_check
        %p756 = pneg %p755
      $region50: #{tpu_custom_call.1} parent=5 // pred_check_branch
        %758 = sbr.rel (%p756) target = $region52
      $region51: #{tpu_custom_call.1} parent=5 // pred_region
        %s759 = ssub.s32 %s17, 2
        // Predicated region
        $region53: #{tpu_custom_call.1} parent=51 // pred_check
          %p760 = pneg %p156
        $region54: #{tpu_custom_call.1} parent=51 // pred_check_branch
          %762 = sbr.rel (%p760) target = $region56
        $region55: #{tpu_custom_call.1} parent=51 // pred_region
          %s763 = sand.u32 %s141, 1
          %s764 = scalar_lea.sflag [#allocation4], %s763
          %s765 = sand.u32 %s141, 1
          %s766 = smul.addr %s765, 64
          %s767 = scalar_lea.vmem [#allocation5], %s766
          %768 = dma.done %s764, 1024
        $region56: #{tpu_custom_call.1} parent=51 // pred_fallthru
          _
      $region52: #{tpu_custom_call.1} parent=5 // pred_fallthru
        _
    $region6: #{tpu_custom_call.1} parent=1 // loop_footer
      %s21 = sadd.s32 1, %s17
    $region7: #{tpu_custom_call.1} parent=1 // loop_footer_branch
      %16 = sbr.rel target = $region3
    $region8: #{tpu_custom_call.1} parent=1 // loop_exit
      _
    %769 = vsyncpa [#allocation3], 1
    %s770 = scalar_lea.sflag [#allocation3], 1
    %771 = vsyncpa %s770, 1
    %772 = vsyncpa [#allocation4], 1
    %s773 = scalar_lea.sflag [#allocation4], 1
    %774 = vsyncpa %s773, 1

</llo_original>
